<compile_context>
chip_gen: v6e
topology: v6e:2x2x1
jax: 0.10.0
libtpu: 0.0.40
codegen_flags: <defaults>
</compile_context>

<pallas_src>
import jax
import jax.numpy as jnp
from jax.experimental import pallas as pl
from jax.experimental.pallas import tpu as pltpu


def _round_up(x, m):
    return ((x + m - 1) // m) * m


def critic_kernel(s_ref, a_ref, w1s_ref, w1a_ref, b1_ref, w2_ref, b2_ref,
                  w3_ref, b3_ref, out_ref):
    # Layer 1: split matmul replaces cat([state, action], -1) @ W1.
    h1 = jnp.dot(s_ref[...], w1s_ref[...], preferred_element_type=jnp.float32)
    h1 = h1 + jnp.dot(a_ref[...], w1a_ref[...],
                      preferred_element_type=jnp.float32)
    h1 = jnp.maximum(h1 + b1_ref[...], 0.0)          # f32 bias + ReLU (VPU)

    # Layer 2: cast activations back to the matmul dtype for the MXU;
    # accumulation stays f32.
    h2 = jnp.dot(h1.astype(w2_ref.dtype), w2_ref[...],
                 preferred_element_type=jnp.float32)
    h2 = jnp.maximum(h2 + b2_ref[...], 0.0)

    # Layer 3: Linear(H2, 1) as VPU broadcast-mul + XLU lane reduce, with an
    # SMEM scalar bias; relaid out lane-dense into the (1, 8, TB//8) block.
    q = jnp.sum(h2 * w3_ref[...], axis=-1) + b3_ref[0]        # (TB,) f32
    out_ref[...] = q.reshape(out_ref.shape).astype(out_ref.dtype)


def critic_forward(state, action, params, *, block_b=1024,
                   matmul_dtype=jnp.bfloat16):
    """Pallas equivalent of CriticNetwork.forward. Returns shape [batch]."""
    w1, b1, w2, b2, w3, b3 = params
    B, state_dim = state.shape
    action_dim = action.shape[1]
    in_dim = state_dim + action_dim
    h1_dim = w1.shape[1]
    h2_dim = w2.shape[1]

    # MXU operands in matmul_dtype (bf16 by default); split W1 so the kernel
    # never concatenates along the lane axis.
    w1s = w1[:state_dim].astype(matmul_dtype)
    w1a = w1[state_dim:].astype(matmul_dtype)
    w2_c = w2.astype(matmul_dtype)
    state_c = state.astype(matmul_dtype)
    action_c = action.astype(matmul_dtype)

    # Elementwise operands stay f32 (no bf16 VPU on v5e; keeps numerics close
    # to the PyTorch f32 reference).
    b1_2d = b1.reshape(1, h1_dim).astype(jnp.float32)
    b2_2d = b2.reshape(1, h2_dim).astype(jnp.float32)
    w3_row = w3.reshape(1, h2_dim).astype(jnp.float32)
    b3_1d = b3.reshape(1).astype(jnp.float32)          # SMEM scalar

    # Batch tiling: TB rows per grid step, forced to a sublane multiple of 8.
    TB = _round_up(min(block_b, B), 8)
    B_pad = _round_up(B, TB)
    if B_pad != B:
        # Padded rows compute non-zero garbage (relu(b1)->...), sliced off
        # below; nothing else ever consumes the padded buffer.
        state_c = jnp.pad(state_c, ((0, B_pad - B), (0, 0)))
        action_c = jnp.pad(action_c, ((0, B_pad - B), (0, 0)))

    n_tiles = B_pad // TB
    out_lanes = TB // 8          # lane width of the output slab

    def batch_block(shape):
        return pl.BlockSpec(shape, lambda i: (i, 0))

    def resident(shape):
        # Constant index map -> block stays VMEM-resident across grid steps.
        return pl.BlockSpec(shape, lambda i: (0, 0))

    itemsize = jnp.dtype(matmul_dtype).itemsize
    cost = pl.CostEstimate(
        flops=2 * B_pad * (in_dim * h1_dim + h1_dim * h2_dim + h2_dim),
        transcendentals=0,
        bytes_accessed=(B_pad * in_dim * itemsize                 # streamed in
                        + (in_dim * h1_dim + h1_dim * h2_dim) * itemsize
                        + (h1_dim + 2 * h2_dim + 1) * 4           # f32 consts
                        + B_pad * 4))                             # f32 out

    out = pl.pallas_call(
        critic_kernel,
        out_shape=jax.ShapeDtypeStruct((n_tiles, 8, out_lanes), jnp.float32),
        grid=(n_tiles,),
        in_specs=[
            batch_block((TB, state_dim)),        # state  (streamed)
            batch_block((TB, action_dim)),       # action (streamed)
            resident((state_dim, h1_dim)),       # W1[:state_dim]
            resident((action_dim, h1_dim)),      # W1[state_dim:]
            resident((1, h1_dim)),               # b1 (f32)
            resident((h1_dim, h2_dim)),          # W2
            resident((1, h2_dim)),               # b2 (f32)
            resident((1, h2_dim)),               # w3 row (f32)
            pl.BlockSpec(memory_space=pltpu.MemorySpace.SMEM),   # b3 scalar
        ],
        out_specs=pl.BlockSpec((1, 8, out_lanes), lambda i: (i, 0, 0)),
        compiler_params=pltpu.CompilerParams(
            dimension_semantics=("parallel",)),
        cost_estimate=cost,
    )(state_c, action_c, w1s, w1a, b1_2d, w2_c, b2_2d, w3_row, b3_1d)

    # Lane-dense slab -> flat [B] (drop batch padding). Matches .squeeze(-1).
    return out.reshape(B_pad)[:B]


def init_params(key, state_dim, action_dim, hidden_sizes=(128, 128)):
    """PyTorch-Linear-style init: U(-1/sqrt(fan_in), 1/sqrt(fan_in))."""
    dims = [state_dim + action_dim] + list(hidden_sizes) + [1]
    params = []
    for i in range(len(dims) - 1):
        fan_in, fan_out = dims[i], dims[i + 1]
        key, kw, kb = jax.random.split(key, 3)
        bound = 1.0 / jnp.sqrt(jnp.float32(fan_in))
        # Stored as [in, out] so the kernel does x @ W (PyTorch stores [out, in]).
        w = jax.random.uniform(kw, (fan_in, fan_out), jnp.float32, -bound, bound)
        b = jax.random.uniform(kb, (fan_out,), jnp.float32, -bound, bound)
        params += [w, b]
    return tuple(params)


def critic_reference(state, action, params, matmul_dtype=jnp.float32):
    """Pure-JAX reference (optionally with the same bf16 matmul operands)."""
    w1, b1, w2, b2, w3, b3 = params
    x = jnp.concatenate([state, action], axis=-1).astype(matmul_dtype)
    h1 = jnp.maximum(
        jnp.dot(x, w1.astype(matmul_dtype),
                preferred_element_type=jnp.float32) + b1, 0.0)
    h2 = jnp.maximum(
        jnp.dot(h1.astype(matmul_dtype), w2.astype(matmul_dtype),
                preferred_element_type=jnp.float32) + b2, 0.0)
    return (h2 @ w3 + b3)[:, 0]


if __name__ == "__main__":
    batch = 8
    state_dim = 12
    action_dim = 4
    hidden_sizes = (128, 128)   # module default; lane-aligned hidden layers

    key = jax.random.PRNGKey(0)
    k_params, k_state, k_action = jax.random.split(key, 3)

    params = init_params(k_params, state_dim, action_dim, hidden_sizes)
    state = jax.random.normal(k_state, (batch, state_dim), jnp.float32)
    action = jax.random.normal(k_action, (batch, action_dim), jnp.float32)

    out = critic_forward(state, action, params)
    out = jax.block_until_ready(out)
    assert out.shape == (batch,), out.shape

    # Exact-semantics check (same bf16 matmul operands, f32 accumulation).
    ref_bf16 = critic_reference(state, action, params,
                                matmul_dtype=jnp.bfloat16)
    assert jnp.allclose(out, ref_bf16, atol=2e-3, rtol=2e-3), (out, ref_bf16)

    # Loose check against the full-f32 PyTorch-equivalent forward pass.
    ref_f32 = critic_reference(state, action, params,
                               matmul_dtype=jnp.float32)
    assert jnp.allclose(out, ref_f32, atol=5e-2, rtol=5e-2), (out, ref_f32)

    print("KERNEL_OK")
</pallas_src>

<mosaic_0001>
module attributes {stable_mosaic.version = 11 : i64} {
  func.func @critic_kernel(%arg0: i32, %arg1: memref<8x12xbf16, #tpu.memory_space<vmem>>, %arg2: memref<8x4xbf16, #tpu.memory_space<vmem>>, %arg3: memref<12x128xbf16, #tpu.memory_space<vmem>>, %arg4: memref<4x128xbf16, #tpu.memory_space<vmem>>, %arg5: memref<1x128xf32, #tpu.memory_space<vmem>>, %arg6: memref<128x128xbf16, #tpu.memory_space<vmem>>, %arg7: memref<1x128xf32, #tpu.memory_space<vmem>>, %arg8: memref<1x128xf32, #tpu.memory_space<vmem>>, %arg9: memref<1xf32, #tpu.memory_space<smem>>, %arg10: memref<1x8x1xf32, #tpu.memory_space<vmem>>) attributes {dimension_semantics = [#tpu.dimension_semantics<parallel>], iteration_bounds = array<i64: 1>, scalar_prefetch = 0 : i64, scratch_operands = 0 : i64, tpu.core_type = #tpu.core_type<tc>, window_params = [{transform_indices = @transform_0, window_bounds = array<i64: 8, 12>}, {transform_indices = @transform_1, window_bounds = array<i64: 8, 4>}, {pipeline_mode = #tpu.pipeline_mode<synchronous>, transform_indices = @transform_2, window_bounds = array<i64: 12, 128>}, {pipeline_mode = #tpu.pipeline_mode<synchronous>, transform_indices = @transform_3, window_bounds = array<i64: 4, 128>}, {pipeline_mode = #tpu.pipeline_mode<synchronous>, transform_indices = @transform_4, window_bounds = array<i64: 1, 128>}, {pipeline_mode = #tpu.pipeline_mode<synchronous>, transform_indices = @transform_5, window_bounds = array<i64: 128, 128>}, {pipeline_mode = #tpu.pipeline_mode<synchronous>, transform_indices = @transform_6, window_bounds = array<i64: 1, 128>}, {pipeline_mode = #tpu.pipeline_mode<synchronous>, transform_indices = @transform_7, window_bounds = array<i64: 1, 128>}, {transform_indices = @transform_8, window_bounds = array<i64: 1>}, {transform_indices = @transform_9, window_bounds = array<i64: 1, 8, 1>}]} {
    %c0 = arith.constant 0 : index
    %c0_0 = arith.constant 0 : index
    %0 = vector.load %arg1[%c0, %c0_0] : memref<8x12xbf16, #tpu.memory_space<vmem>>, vector<8x12xbf16>
    %c0_1 = arith.constant 0 : index
    %c0_2 = arith.constant 0 : index
    %1 = vector.load %arg3[%c0_1, %c0_2] : memref<12x128xbf16, #tpu.memory_space<vmem>>, vector<12x128xbf16>
    %cst = arith.constant dense<0.000000e+00> : vector<8x128xf32>
    %2 = tpu.matmul %0, %1, %cst {dimension_numbers = #tpu.dot_dimension_numbers<[1], [0], [0], [1], [0, 0, 1, 1], [], []>} : vector<8x12xbf16>, vector<12x128xbf16>, vector<8x128xf32> -> vector<8x128xf32>
    %c0_3 = arith.constant 0 : index
    %c0_4 = arith.constant 0 : index
    %3 = vector.load %arg2[%c0_3, %c0_4] : memref<8x4xbf16, #tpu.memory_space<vmem>>, vector<8x4xbf16>
    %c0_5 = arith.constant 0 : index
    %c0_6 = arith.constant 0 : index
    %4 = vector.load %arg4[%c0_5, %c0_6] : memref<4x128xbf16, #tpu.memory_space<vmem>>, vector<4x128xbf16>
    %cst_7 = arith.constant dense<0.000000e+00> : vector<8x128xf32>
    %5 = tpu.matmul %3, %4, %cst_7 {dimension_numbers = #tpu.dot_dimension_numbers<[1], [0], [0], [1], [0, 0, 1, 1], [], []>} : vector<8x4xbf16>, vector<4x128xbf16>, vector<8x128xf32> -> vector<8x128xf32>
    %6 = arith.addf %2, %5 : vector<8x128xf32>
    %c0_8 = arith.constant 0 : index
    %c0_9 = arith.constant 0 : index
    %7 = vector.load %arg5[%c0_8, %c0_9] : memref<1x128xf32, #tpu.memory_space<vmem>>, vector<1x128xf32>
    %8 = vector.broadcast %7 : vector<1x128xf32> to vector<8x128xf32>
    %9 = arith.addf %6, %8 : vector<8x128xf32>
    %cst_10 = arith.constant 0.000000e+00 : f32
    %10 = vector.broadcast %cst_10 : f32 to vector<8x128xf32>
    %11 = arith.maximumf %9, %10 : vector<8x128xf32>
    %12 = arith.truncf %11 : vector<8x128xf32> to vector<8x128xbf16>
    %c0_11 = arith.constant 0 : index
    %c0_12 = arith.constant 0 : index
    %13 = vector.load %arg6[%c0_11, %c0_12] : memref<128x128xbf16, #tpu.memory_space<vmem>>, vector<128x128xbf16>
    %cst_13 = arith.constant dense<0.000000e+00> : vector<8x128xf32>
    %14 = tpu.matmul %12, %13, %cst_13 {dimension_numbers = #tpu.dot_dimension_numbers<[1], [0], [0], [1], [0, 0, 1, 1], [], []>} : vector<8x128xbf16>, vector<128x128xbf16>, vector<8x128xf32> -> vector<8x128xf32>
    %c0_14 = arith.constant 0 : index
    %c0_15 = arith.constant 0 : index
    %15 = vector.load %arg7[%c0_14, %c0_15] : memref<1x128xf32, #tpu.memory_space<vmem>>, vector<1x128xf32>
    %16 = vector.broadcast %15 : vector<1x128xf32> to vector<8x128xf32>
    %17 = arith.addf %14, %16 : vector<8x128xf32>
    %cst_16 = arith.constant 0.000000e+00 : f32
    %18 = vector.broadcast %cst_16 : f32 to vector<8x128xf32>
    %19 = arith.maximumf %17, %18 : vector<8x128xf32>
    %c0_17 = arith.constant 0 : index
    %c0_18 = arith.constant 0 : index
    %20 = vector.load %arg8[%c0_17, %c0_18] : memref<1x128xf32, #tpu.memory_space<vmem>>, vector<1x128xf32>
    %21 = vector.broadcast %20 : vector<1x128xf32> to vector<8x128xf32>
    %22 = arith.mulf %19, %21 : vector<8x128xf32>
    %cst_19 = arith.constant dense<0.000000e+00> : vector<8xf32>
    %23 = vector.multi_reduction <add>, %22, %cst_19 [1] : vector<8x128xf32> to vector<8xf32>
    %c0_20 = arith.constant 0 : index
    %24 = memref.load %arg9[%c0_20] : memref<1xf32, #tpu.memory_space<smem>>
    %25 = vector.broadcast %24 : f32 to vector<8xf32>
    %26 = arith.addf %23, %25 : vector<8xf32>
    %27 = vector.shape_cast %26 : vector<8xf32> to vector<1x8x1xf32>
    %c0_21 = arith.constant 0 : index
    %c0_22 = arith.constant 0 : index
    %c0_23 = arith.constant 0 : index
    %28 = vector.load %arg10[%c0_21, %c0_22, %c0_23] : memref<1x8x1xf32, #tpu.memory_space<vmem>>, vector<1x8x1xf32>
    tpu.vector_store %arg10[%c0_21, %c0_22, %c0_23], %27 {strides = array<i32>} : memref<1x8x1xf32, #tpu.memory_space<vmem>>, vector<1x8x1xf32>,
    return
  }
  func.func @transform_0(%arg0: i32) -> (i32, i32) {
    %c0_i32 = arith.constant 0 : i32
    %c0_i32_0 = arith.constant 0 : i32
    return %arg0, %c0_i32 : i32, i32
  }
  func.func @transform_1(%arg0: i32) -> (i32, i32) {
    %c0_i32 = arith.constant 0 : i32
    %c0_i32_0 = arith.constant 0 : i32
    return %arg0, %c0_i32 : i32, i32
  }
  func.func @transform_2(%arg0: i32) -> (i32, i32) {
    %c0_i32 = arith.constant 0 : i32
    %c0_i32_0 = arith.constant 0 : i32
    %c0_i32_1 = arith.constant 0 : i32
    return %c0_i32, %c0_i32_0 : i32, i32
  }
  func.func @transform_3(%arg0: i32) -> (i32, i32) {
    %c0_i32 = arith.constant 0 : i32
    %c0_i32_0 = arith.constant 0 : i32
    %c0_i32_1 = arith.constant 0 : i32
    return %c0_i32, %c0_i32_0 : i32, i32
  }
  func.func @transform_4(%arg0: i32) -> (i32, i32) {
    %c0_i32 = arith.constant 0 : i32
    %c0_i32_0 = arith.constant 0 : i32
    %c0_i32_1 = arith.constant 0 : i32
    return %c0_i32, %c0_i32_0 : i32, i32
  }
  func.func @transform_5(%arg0: i32) -> (i32, i32) {
    %c0_i32 = arith.constant 0 : i32
    %c0_i32_0 = arith.constant 0 : i32
    %c0_i32_1 = arith.constant 0 : i32
    return %c0_i32, %c0_i32_0 : i32, i32
  }
  func.func @transform_6(%arg0: i32) -> (i32, i32) {
    %c0_i32 = arith.constant 0 : i32
    %c0_i32_0 = arith.constant 0 : i32
    %c0_i32_1 = arith.constant 0 : i32
    return %c0_i32, %c0_i32_0 : i32, i32
  }
  func.func @transform_7(%arg0: i32) -> (i32, i32) {
    %c0_i32 = arith.constant 0 : i32
    %c0_i32_0 = arith.constant 0 : i32
    %c0_i32_1 = arith.constant 0 : i32
    return %c0_i32, %c0_i32_0 : i32, i32
  }
  func.func @transform_8(%arg0: i32) -> i32 {
    %c0_i32 = arith.constant 0 : i32
    %c0_i32_0 = arith.constant 0 : i32
    return %c0_i32 : i32
  }
  func.func @transform_9(%arg0: i32) -> (i32, i32, i32) {
    %c0_i32 = arith.constant 0 : i32
    %c0_i32_0 = arith.constant 0 : i32
    %c0_i32_1 = arith.constant 0 : i32
    return %arg0, %c0_i32, %c0_i32_0 : i32, i32, i32
  }
}

</mosaic_0001>

<llo_original>
// kernel: tpu_custom_call.1
$region0: #{tpu_custom_call.1}
  #allocation0 [shape = 'u32[]', space=smem, size = 0x4, offset = 0x4, fixed_abs, tag = 'smem constant byte address 0x4 - core index']
  #allocation1 [shape = 'u32[144,128]{1,0:T(1,128)}', space=vmem, size = 0x12000, scoped, tag = 'internal scratch']
  #allocation2 [shape = 'f32[1]{0:T(128)S(6)}', space=smem, size = 0x200, scoped, tag = 'scoped memory for tpu_custom_call.1']
  %s0 = inlined_call_operand.hbm [shape: bf16[8,12], index: 0, kind: input, shape index: {}]
  %s1 = inlined_call_operand.vmem [shape: bf16[8,4], index: 1, kind: input, shape index: {}]
  %s2 = inlined_call_operand.vmem [shape: bf16[12,128], index: 2, kind: input, shape index: {}]
  %s3 = inlined_call_operand.vmem [shape: bf16[4,128], index: 3, kind: input, shape index: {}]
  %s4 = inlined_call_operand.vmem [shape: f32[1,128], index: 4, kind: input, shape index: {}]
  %s5 = inlined_call_operand.hbm [shape: bf16[128,128], index: 5, kind: input, shape index: {}]
  %s6 = inlined_call_operand.vmem [shape: f32[1,128], index: 6, kind: input, shape index: {}]
  %s7 = inlined_call_operand.vmem [shape: f32[1,128], index: 7, kind: input, shape index: {}]
  %s8 = inlined_call_operand.<no memory space> [shape: f32[1], index: 8, kind: input, shape index: {}]
  %s9 = inlined_call_operand.vmem [shape: f32[1,8,1], index: 9, kind: output, shape index: {}]
  %s10 = sld [smem:[#allocation0]]
  $region54: #{tpu_custom_call.1} parent=0
    _
  %s12 = ssub.s32 1, %s10
  %s13 = scalar_select 0, %s12, %s10
  %14 = sst [smem:[#allocation2]] %s8
  $region1: #{tpu_custom_call.1} parent=0
    #allocation3 [shape = 'u8[2048]{0}', space=vmem, size = 0x800, scoped, tag = 'input window, operand 0, single buffered']
    #allocation4 [shape = 's32[1]{0}', space=sflag, size = 0x4, scoped, tag = 'scoped memory for tpu_custom_call.1']
    #allocation5 [shape = 'u8[32768]{0}', space=vmem, size = 0x8000, scoped, tag = 'input window, operand 5, single buffered']
    #allocation6 [shape = 's32[1]{0}', space=sflag, size = 0x4, scoped, tag = 'scoped memory for tpu_custom_call.1']
    %15 = vsyncpa [#allocation4], 0
    %16 = vsyncpa [#allocation6], 0
    // Predicated region
    $region2: #{tpu_custom_call.1} parent=1 // pred_check
      _
    $region3: #{tpu_custom_call.1} parent=1 // pred_check_branch
      %18 = sbr.rel (0) target = $region5
    $region4: #{tpu_custom_call.1} parent=1 // pred_region
      %s20 = ssub.s32 64, 64
      %21 = vsyncadd [#allocation4], %s20
      %s23 = sshll.u32 [#allocation3], 4
      %s24 = int_to_ptr.vmem [resolvable:$true] %s23
      %26 = dma.hbm_to_vmem [thread:$0]  %s0, 64, %s24, [#allocation4]
    $region5: #{tpu_custom_call.1} parent=1 // pred_fallthru
      _
    // Predicated region
    $region6: #{tpu_custom_call.1} parent=1 // pred_check
      _
    $region7: #{tpu_custom_call.1} parent=1 // pred_check_branch
      %28 = sbr.rel (0) target = $region9
    $region8: #{tpu_custom_call.1} parent=1 // pred_region
      _
    $region9: #{tpu_custom_call.1} parent=1 // pred_fallthru
      _
    // Predicated region
    $region10: #{tpu_custom_call.1} parent=1 // pred_check
      _
    $region11: #{tpu_custom_call.1} parent=1 // pred_check_branch
      %30 = sbr.rel (0) target = $region13
    $region12: #{tpu_custom_call.1} parent=1 // pred_region
      _
    $region13: #{tpu_custom_call.1} parent=1 // pred_fallthru
      _
    // Predicated region
    $region14: #{tpu_custom_call.1} parent=1 // pred_check
      _
    $region15: #{tpu_custom_call.1} parent=1 // pred_check_branch
      %32 = sbr.rel (0) target = $region17
    $region16: #{tpu_custom_call.1} parent=1 // pred_region
      _
    $region17: #{tpu_custom_call.1} parent=1 // pred_fallthru
      _
    // Predicated region
    $region18: #{tpu_custom_call.1} parent=1 // pred_check
      _
    $region19: #{tpu_custom_call.1} parent=1 // pred_check_branch
      %34 = sbr.rel (0) target = $region21
    $region20: #{tpu_custom_call.1} parent=1 // pred_region
      _
    $region21: #{tpu_custom_call.1} parent=1 // pred_fallthru
      _
    // Predicated region
    $region22: #{tpu_custom_call.1} parent=1 // pred_check
      _
    $region23: #{tpu_custom_call.1} parent=1 // pred_check_branch
      %36 = sbr.rel (0) target = $region25
    $region24: #{tpu_custom_call.1} parent=1 // pred_region
      %s38 = ssub.s32 1024, 1024
      %39 = vsyncadd [#allocation6], %s38
      %s40 = sshll.u32 [#allocation5], 4
      %s41 = int_to_ptr.vmem [resolvable:$true] %s40
      %46 = dma.hbm_to_vmem [thread:$0]  %s5, 1024, %s41, [#allocation6], 64, 64, 4
    $region25: #{tpu_custom_call.1} parent=1 // pred_fallthru
      _
    // Predicated region
    $region26: #{tpu_custom_call.1} parent=1 // pred_check
      _
    $region27: #{tpu_custom_call.1} parent=1 // pred_check_branch
      %48 = sbr.rel (0) target = $region29
    $region28: #{tpu_custom_call.1} parent=1 // pred_region
      _
    $region29: #{tpu_custom_call.1} parent=1 // pred_fallthru
      _
    // Predicated region
    $region30: #{tpu_custom_call.1} parent=1 // pred_check
      _
    $region31: #{tpu_custom_call.1} parent=1 // pred_check_branch
      %50 = sbr.rel (0) target = $region33
    $region32: #{tpu_custom_call.1} parent=1 // pred_region
      _
    $region33: #{tpu_custom_call.1} parent=1 // pred_fallthru
      _
    // Predicated region
    $region34: #{tpu_custom_call.1} parent=1 // pred_check
      _
    $region35: #{tpu_custom_call.1} parent=1 // pred_check_branch
      %52 = sbr.rel (0) target = $region37
    $region36: #{tpu_custom_call.1} parent=1 // pred_region
      _
    $region37: #{tpu_custom_call.1} parent=1 // pred_fallthru
      _
    // Predicated region
    $region38: #{tpu_custom_call.1} parent=1 // pred_check
      _
    $region39: #{tpu_custom_call.1} parent=1 // pred_check_branch
      %54 = sbr.rel (0) target = $region41
    $region40: #{tpu_custom_call.1} parent=1 // pred_region
      %55 = dma.done [#allocation4], 64
    $region41: #{tpu_custom_call.1} parent=1 // pred_fallthru
      _
    // Predicated region
    $region42: #{tpu_custom_call.1} parent=1 // pred_check
      _
    $region43: #{tpu_custom_call.1} parent=1 // pred_check_branch
      %57 = sbr.rel (0) target = $region45
    $region44: #{tpu_custom_call.1} parent=1 // pred_region
      %58 = dma.done [#allocation6], 1024
    $region45: #{tpu_custom_call.1} parent=1 // pred_fallthru
      _
    %v60 = vld [vmem:[#allocation3] sm:$0xf]
    %v61 = vld [vmem:[%s2] sm:$0xf]
    %v62 = vld [vmem:[%s2 + $0x4] sm:$0x3]
    %v63 = vld [vmem:[%s1] sm:$0xf]
    %v64 = vld [vmem:[%s3] sm:$0x3]
    %vm65 = vcmask 31744
    %v67 = vsel %vm65, %v63, 0
    %vm69 = vcmask 1041408
    %v71 = vsel %vm69, %v64, 0
    %73 = vmatprep.subr.bf16.mxu0 0
    %74 = vmatpush1.bf16.msra.mxu0 0
    %75 = vmatprep.subr.bf16.mxu0 0
    %76 = vmatpush1.bf16.msra.mxu0 0
    %77 = vmatprep.subr.bf16.mxu0 0
    %78 = vmatpush1.bf16.msra.mxu0 0
    %79 = vmatprep.subr.bf16.mxu0 0
    %80 = vmatpush1.bf16.msra.mxu0 0
    %81 = vmatprep.subr.bf16.mxu0 0
    %82 = vmatpush1.bf16.msra.mxu0 0
    %83 = vmatprep.subr.bf16.mxu0 0
    %84 = vmatpush1.bf16.msra.mxu0 0
    %85 = vmatprep.subr.bf16.mxu0 0
    %86 = vmatpush1.bf16.msra.mxu0 0
    %87 = vmatprep.subr.bf16.mxu0 0
    %88 = vmatpush1.bf16.msra.mxu0 %v71
    %89 = vmatprep.subr.bf16.mxu0 0
    %90 = vmatpush2.bf16.msra.mxu0 0
    %91 = vmatprep.subr.bf16.mxu0 0
    %92 = vmatpush2.bf16.msra.mxu0 0
    %93 = vmatprep.subr.bf16.mxu0 0
    %94 = vmatpush2.bf16.msra.mxu0 0
    %95 = vmatprep.subr.bf16.mxu0 0
    %96 = vmatpush2.bf16.msra.mxu0 0
    %97 = vmatprep.subr.bf16.mxu0 0
    %98 = vmatpush2.bf16.msra.mxu0 0
    %99 = vmatprep.subr.bf16.mxu0 0
    %100 = vmatpush2.bf16.msra.mxu0 0
    %101 = vmatprep.subr.bf16.mxu0 0
    %102 = vmatpush2.bf16.msra.mxu0 0
    %103 = vmatprep.subr.bf16.mxu0 0
    %104 = vmatpush2.bf16.msra.mxu0 0
    %105 = vmatprep.mubr.bf16.mxu0 0
    %106 = vmatmul.mubr.bf16.gmra.mxu0 %v67
    %v107 = vpop.f32.mrf.mxu0
    %v108 = vadd.f32 0.0, %v107
    %v109 = vpop.f32.mrf.mxu0
    %v110 = vpop.f32.mrf.mxu0
    %v111 = vpop.f32.mrf.mxu0
    %112 = vdwg.mxu0
    %v115 = vunpack.c.l.b16 %v61
    %v116 = vunpack.c.l.b16 %v62
    %v117 = vpack.c.b16 %v116, %v115
    %vm118 = vcmask 97280
    %v120 = vsel %vm118, %v60, 0
    %vm122 = vcmask 1045504
    %v124 = vsel %vm122, %v117, 0
    %126 = vmatprep.subr.bf16.mxu0 0
    %127 = vmatpush1.bf16.msra.mxu0 0
    %128 = vmatprep.subr.bf16.mxu0 0
    %129 = vmatpush1.bf16.msra.mxu0 0
    %130 = vmatprep.subr.bf16.mxu0 0
    %131 = vmatpush1.bf16.msra.mxu0 0
    %132 = vmatprep.subr.bf16.mxu0 0
    %133 = vmatpush1.bf16.msra.mxu0 0
    %134 = vmatprep.subr.bf16.mxu0 0
    %135 = vmatpush1.bf16.msra.mxu0 0
    %136 = vmatprep.subr.bf16.mxu0 0
    %137 = vmatpush1.bf16.msra.mxu0 0
    %138 = vmatprep.subr.bf16.mxu0 0
    %139 = vmatpush1.bf16.msra.mxu0 0
    %140 = vmatprep.subr.bf16.mxu0 0
    %141 = vmatpush1.bf16.msra.mxu0 %v124
    %142 = vmatprep.subr.bf16.mxu0 0
    %143 = vmatpush2.bf16.msra.mxu0 0
    %144 = vmatprep.subr.bf16.mxu0 0
    %145 = vmatpush2.bf16.msra.mxu0 0
    %146 = vmatprep.subr.bf16.mxu0 0
    %147 = vmatpush2.bf16.msra.mxu0 0
    %148 = vmatprep.subr.bf16.mxu0 0
    %149 = vmatpush2.bf16.msra.mxu0 0
    %150 = vmatprep.subr.bf16.mxu0 0
    %151 = vmatpush2.bf16.msra.mxu0 0
    %152 = vmatprep.subr.bf16.mxu0 0
    %153 = vmatpush2.bf16.msra.mxu0 0
    %154 = vmatprep.subr.bf16.mxu0 0
    %155 = vmatpush2.bf16.msra.mxu0 0
    %156 = vmatprep.subr.bf16.mxu0 0
    %157 = vmatpush2.bf16.msra.mxu0 0
    %158 = vmatprep.mubr.bf16.mxu0 0
    %159 = vmatmul.mubr.bf16.gmra.mxu0 %v120
    %v160 = vpop.f32.mrf.mxu0
    %v161 = vadd.f32 %v108, %v160
    %v162 = vpop.f32.mrf.mxu0
    %v163 = vpop.f32.mrf.mxu0
    %v164 = vpop.f32.mrf.mxu0
    %165 = vdwg.mxu0
    %v166 = vld [vmem:[%s4] sm:$0x1]
    %v168 = vlaneseq
    %v169 = vshrl.u32 %v168, 7
    %v170 = vsub.s32 0, %v169
    %v171 = vrot.slane %v166, %v170
    %v173 = vadd.f32 %v161, %v171
    %v174 = vmax.f32 %v173, 0.0
    %v175 = vpack.c.bf16 %v174, %v174
    %v176 = vld [vmem:[#allocation5] sm:$0xf]
    %v177 = vld [vmem:[#allocation5 + $0x4] sm:$0xf]
    %v178 = vld [vmem:[#allocation5 + $0x8] sm:$0xf]
    %v179 = vld [vmem:[#allocation5 + $0xc] sm:$0xf]
    %v180 = vld [vmem:[#allocation5 + $0x10] sm:$0xf]
    %v181 = vld [vmem:[#allocation5 + $0x14] sm:$0xf]
    %v182 = vld [vmem:[#allocation5 + $0x18] sm:$0xf]
    %v183 = vld [vmem:[#allocation5 + $0x1c] sm:$0xf]
    %v184 = vld [vmem:[#allocation5 + $0x20] sm:$0xf]
    %v185 = vld [vmem:[#allocation5 + $0x24] sm:$0xf]
    %v186 = vld [vmem:[#allocation5 + $0x28] sm:$0xf]
    %v187 = vld [vmem:[#allocation5 + $0x2c] sm:$0xf]
    %v188 = vld [vmem:[#allocation5 + $0x30] sm:$0xf]
    %v189 = vld [vmem:[#allocation5 + $0x34] sm:$0xf]
    %v190 = vld [vmem:[#allocation5 + $0x38] sm:$0xf]
    %v191 = vld [vmem:[#allocation5 + $0x3c] sm:$0xf]
    %v192 = vld [vmem:[%s6] sm:$0x1]
    %v194 = vlaneseq
    %v195 = vshrl.u32 %v194, 7
    %v196 = vsub.s32 0, %v195
    %v197 = vrot.slane %v192, %v196
    %v215 = vunpack.c.l.b16 %v176
    %v216 = vunpack.c.l.b16 %v177
    %v217 = vunpack.c.l.b16 %v178
    %v218 = vunpack.c.l.b16 %v179
    %v219 = vunpack.c.l.b16 %v180
    %v220 = vunpack.c.l.b16 %v181
    %v221 = vunpack.c.l.b16 %v182
    %v222 = vunpack.c.l.b16 %v183
    %v223 = vunpack.c.l.b16 %v184
    %v224 = vunpack.c.l.b16 %v185
    %v225 = vunpack.c.l.b16 %v186
    %v226 = vunpack.c.l.b16 %v187
    %v227 = vunpack.c.l.b16 %v188
    %v228 = vunpack.c.l.b16 %v189
    %v229 = vunpack.c.l.b16 %v190
    %v230 = vunpack.c.l.b16 %v191
    %v231 = vpack.c.b16 %v216, %v215
    %v232 = vpack.c.b16 %v218, %v217
    %v233 = vpack.c.b16 %v220, %v219
    %v234 = vpack.c.b16 %v222, %v221
    %v235 = vpack.c.b16 %v224, %v223
    %v236 = vpack.c.b16 %v226, %v225
    %v237 = vpack.c.b16 %v228, %v227
    %v238 = vpack.c.b16 %v230, %v229
    %247 = vmatprep.subr.bf16.mxu0 0
    %248 = vmatpush1.bf16.msra.mxu0 %v238
    %249 = vmatprep.subr.bf16.mxu0 0
    %250 = vmatpush1.bf16.msra.mxu0 %v237
    %251 = vmatprep.subr.bf16.mxu0 0
    %252 = vmatpush1.bf16.msra.mxu0 %v236
    %253 = vmatprep.subr.bf16.mxu0 0
    %254 = vmatpush1.bf16.msra.mxu0 %v235
    %255 = vmatprep.subr.bf16.mxu0 0
    %256 = vmatpush1.bf16.msra.mxu0 %v234
    %257 = vmatprep.subr.bf16.mxu0 0
    %258 = vmatpush1.bf16.msra.mxu0 %v233
    %259 = vmatprep.subr.bf16.mxu0 0
    %260 = vmatpush1.bf16.msra.mxu0 %v232
    %261 = vmatprep.subr.bf16.mxu0 0
    %262 = vmatpush1.bf16.msra.mxu0 %v231
    %263 = vmatprep.subr.bf16.mxu0 0
    %264 = vmatpush2.bf16.msra.mxu0 0
    %265 = vmatprep.subr.bf16.mxu0 0
    %266 = vmatpush2.bf16.msra.mxu0 0
    %267 = vmatprep.subr.bf16.mxu0 0
    %268 = vmatpush2.bf16.msra.mxu0 0
    %269 = vmatprep.subr.bf16.mxu0 0
    %270 = vmatpush2.bf16.msra.mxu0 0
    %271 = vmatprep.subr.bf16.mxu0 0
    %272 = vmatpush2.bf16.msra.mxu0 0
    %273 = vmatprep.subr.bf16.mxu0 0
    %274 = vmatpush2.bf16.msra.mxu0 0
    %275 = vmatprep.subr.bf16.mxu0 0
    %276 = vmatpush2.bf16.msra.mxu0 0
    %277 = vmatprep.subr.bf16.mxu0 0
    %278 = vmatpush2.bf16.msra.mxu0 0
    %279 = vmatprep.mubr.bf16.mxu0 0
    %280 = vmatmul.mubr.bf16.gmra.mxu0 %v175
    %v281 = vpop.f32.mrf.mxu0
    %v282 = vadd.f32 %v197, %v281
    %v283 = vpop.f32.mrf.mxu0
    %v284 = vpop.f32.mrf.mxu0
    %v285 = vpop.f32.mrf.mxu0
    %286 = vdwg.mxu0
    %v287 = vmax.f32 %v282, 0.0
    %v288 = vld [vmem:[%s7] sm:$0x1]
    %v290 = vlaneseq
    %v291 = vshrl.u32 %v290, 7
    %v292 = vsub.s32 0, %v291
    %v293 = vrot.slane %v288, %v292
    %v295 = vmul.f32 %v287, %v293
    %296 = vadd.xlane.f32.xlu0 %v295
    %v297 = vpop.xlane.xlu0 %296
    %s298 = sld [smem:[#allocation2]]
    %v299 = vstv %s298
    %v300 = vadd.f32 %v297, %v299
    %vm301 = vcmask 7168
    %302 = vst.msk [vmem:[%s9] sm:$0xff] %vm301, %v300
    // Predicated region
    $region46: #{tpu_custom_call.1} parent=1 // pred_check
      _
    $region47: #{tpu_custom_call.1} parent=1 // pred_check_branch
      %304 = sbr.rel (0) target = $region49
    $region48: #{tpu_custom_call.1} parent=1 // pred_region
      _
    $region49: #{tpu_custom_call.1} parent=1 // pred_fallthru
      _
    // Predicated region
    $region50: #{tpu_custom_call.1} parent=1 // pred_check
      _
    $region51: #{tpu_custom_call.1} parent=1 // pred_check_branch
      %306 = sbr.rel (0) target = $region53
    $region52: #{tpu_custom_call.1} parent=1 // pred_region
      _
    $region53: #{tpu_custom_call.1} parent=1 // pred_fallthru
      _
    %307 = vsyncpa [#allocation4], 1
    %308 = vsyncpa [#allocation6], 1

</llo_original>
